<compile_context>
chip_gen: v7x
topology: tpu7x:2x2x1
jax: 0.10.0
libtpu: 0.0.40
codegen_flags: <defaults>
</compile_context>

<pallas_src>
import functools

import jax
import jax.numpy as jnp
from jax import lax
from jax.experimental import pallas as pl
from jax.experimental.pallas import tpu as pltpu

ALIGN_CORNERS = True
BALANCE_WEIGHTS = [1]
NUM_OUTPUTS = 1

# Sentinel prob for ignored / out-of-bounds pixels: strictly larger than any softmax
# prob and any possible threshold, so such pixels are never selected.
_INVALID_PROB = 2.0

_DEFAULT_CLASS_WEIGHTS = [
    1.0, 2.2438960966453663, 1.0367368849500223, 3.684620397193553,
    3.844600329110712, 3.7614326467956447, 2.138889000323256,
    2.972463646614637, 1.2325602611778486, 6.039683119378457,
    5.002939087461785,
]


def _round_up(x, m):
    return ((x + m - 1) // m) * m


def _cdiv(a, b):
    return (a + b - 1) // b


# ----------------------------------------------------------------------------
# Pallas kernel: per-pixel weighted CE (reduction='none') + target-class prob.
#   inputs : logits [1, C, T] (f32 or bf16), labels [1, 1, T] int32
#   outputs: loss   [1, 1, T] f32 (0 where ignored),
#            prob   [1, 1, T] f32 (_INVALID_PROB where ignored)
# Layout: flattened H*W on the 128-lane axis (lane-dense), C on sublanes.
# ----------------------------------------------------------------------------
def _ohem_ce_kernel(logits_ref, labels_ref, loss_ref, prob_ref, *,
                    ignore_label, hw, tile_hw, class_weights):
    x = logits_ref[0].astype(jnp.float32)                  # [C, T]  f32 accumulation
    lab = labels_ref[0]                                    # [1, T]  int32

    # Ragged-tail mask: lanes whose global index >= H*W (partial last block) are
    # treated as ignored.  Their (garbage) outputs are also dropped by Pallas'
    # partial-block writeback, so no wrapper-side padding is needed.
    lane = lax.broadcasted_iota(jnp.int32, lab.shape, 1)   # [1, T]
    in_bounds = (pl.program_id(1) * tile_hw + lane) < hw
    valid = jnp.logical_and(lab != ignore_label, in_bounds)
    lab_safe = jnp.where(valid, lab, 0)                    # clamp ignored to class 0

    # Fused one-hot over the class (sublane) axis — bool mask + selects, no f32
    # convert / multiplies.
    cls = lax.broadcasted_iota(jnp.int32, x.shape, 0)      # [C, T]
    onehot = cls == lab_safe                               # [C, T] bool

    # Numerically stable log-softmax over C (axis 0); e = exp(x-m) is reused for the
    # target prob so there is no second per-class exp.
    m = jnp.max(x, axis=0, keepdims=True)                  # [1, T]
    e = jnp.exp(x - m)                                     # [C, T]
    s = jnp.sum(e, axis=0, keepdims=True)                  # [1, T]
    tlogit = jnp.sum(jnp.where(onehot, x, 0.0), axis=0, keepdims=True)   # logits[target]
    tnum = jnp.sum(jnp.where(onehot, e, 0.0), axis=0, keepdims=True)     # exp(x[t]-m)

    nll = (m - tlogit) + jnp.log(s)                        # -log softmax[target]
    prob = tnum / s                                        # softmax prob of target

    # Target-class weight via compile-time constant selects (weights baked in).
    wpix = jnp.full(lab.shape, class_weights[0], dtype=jnp.float32)
    for c in range(1, len(class_weights)):
        wpix = jnp.where(lab_safe == c, jnp.float32(class_weights[c]), wpix)

    loss_ref[0] = jnp.where(valid, nll * wpix, 0.0)        # CE(weight, ignore) 'none'
    prob_ref[0] = jnp.where(valid, prob, jnp.float32(_INVALID_PROB))


def _per_pixel_ce_and_prob(score, target, class_weights, ignore_label, *,
                           tile_hw_max=32768):
    """Runs the Pallas kernel on NCHW logits / int labels.

    Returns (loss_map [N, HW], prob_map [N, HW]) — no padding, exact HW extent."""
    N, C, H, W = score.shape
    assert len(class_weights) == C, "class-weight length must equal num classes"
    HW = H * W

    tile_hw = min(int(tile_hw_max), _round_up(HW, 128))
    n_tiles = _cdiv(HW, tile_hw)
    # Keep >= 2 grid blocks when possible so the fully-"parallel" grid can be
    # sharded across both v7x TensorCores.
    if N * n_tiles < 2 and tile_hw > 128:
        tile_hw = _round_up(_cdiv(tile_hw, 2), 128)
        n_tiles = _cdiv(HW, tile_hw)

    # Keep the native logits dtype (bf16 inputs stream at half HBM BW); the kernel
    # upcasts to f32 before the log-softmax.
    logits = score.reshape(N, C, HW)
    labels = target.astype(jnp.int32).reshape(N, 1, HW)

    kernel = functools.partial(
        _ohem_ce_kernel, ignore_label=ignore_label, hw=HW, tile_hw=tile_hw,
        class_weights=tuple(class_weights))

    loss_map, prob_map = pl.pallas_call(
        kernel,
        out_shape=(
            jax.ShapeDtypeStruct((N, 1, HW), jnp.float32),
            jax.ShapeDtypeStruct((N, 1, HW), jnp.float32),
        ),
        grid_spec=pltpu.PrefetchScalarGridSpec(
            num_scalar_prefetch=0,
            grid=(N, n_tiles),
            in_specs=[
                pl.BlockSpec((1, C, tile_hw), lambda n, t: (n, 0, t)),  # logits
                pl.BlockSpec((1, 1, tile_hw), lambda n, t: (n, 0, t)),  # labels
            ],
            out_specs=(
                pl.BlockSpec((1, 1, tile_hw), lambda n, t: (n, 0, t)),
                pl.BlockSpec((1, 1, tile_hw), lambda n, t: (n, 0, t)),
            ),
        ),
        compiler_params=pltpu.CompilerParams(
            dimension_semantics=("parallel", "parallel"),
            vmem_limit_bytes=32 * 1024 * 1024),
    )(logits, labels)

    return loss_map.reshape(N, HW), prob_map.reshape(N, HW)


# ----------------------------------------------------------------------------
# Plain-JAX glue
# ----------------------------------------------------------------------------
def _bilinear_resize_align_corners(x, out_h, out_w):
    """F.interpolate(mode='bilinear', align_corners=True) for NCHW inputs."""
    n, c, h, w = x.shape
    if (h, w) == (out_h, out_w):
        return x
    ys = jnp.linspace(0.0, float(h - 1), out_h)
    xs = jnp.linspace(0.0, float(w - 1), out_w)
    y0 = jnp.floor(ys).astype(jnp.int32)
    x0 = jnp.floor(xs).astype(jnp.int32)
    y1 = jnp.minimum(y0 + 1, h - 1)
    x1 = jnp.minimum(x0 + 1, w - 1)
    wy = (ys - y0.astype(ys.dtype))[None, None, :, None]
    wx = (xs - x0.astype(xs.dtype))[None, None, None, :]

    def g(yi, xi):
        return x[:, :, yi, :][:, :, :, xi]

    top = g(y0, x0) * (1.0 - wx) + g(y0, x1) * wx
    bot = g(y1, x0) * (1.0 - wx) + g(y1, x1) * wx
    return top * (1.0 - wy) + bot * wy


def _kth_smallest_nonneg_f32(x, k):
    """Exact k-th smallest (0-indexed, scalar k) of a non-negative f32 array.

    Binary search over IEEE-754 bit patterns (order-preserving for non-negative
    floats): ~32 streaming count passes instead of the O(n log n) global sort that
    dominated end-to-end time for real segmentation shapes."""
    bits = lax.bitcast_convert_type(x.astype(jnp.float32), jnp.int32)
    kp1 = (k + 1).astype(jnp.int32)
    hi0 = lax.bitcast_convert_type(jnp.float32(_INVALID_PROB), jnp.int32)

    def body(_, carry):
        lo, hi = carry
        mid = lo + (hi - lo) // 2
        ge = jnp.sum((bits <= mid).astype(jnp.int32)) >= kp1
        return jnp.where(ge, lo, mid + 1), jnp.where(ge, mid, hi)

    lo, _ = lax.fori_loop(0, 32, body, (jnp.int32(0), hi0))
    return lax.bitcast_convert_type(lo, jnp.float32)


class OhemCrossEntropyPallas:
    def __init__(self, ignore_label=-1, thres=0.7, min_kept=100000, weight=None):
        self.thresh = float(thres)
        self.min_kept = max(1, int(min_kept))
        self.ignore_label = int(ignore_label)
        w = _DEFAULT_CLASS_WEIGHTS if weight is None else weight
        # Class weights are fixed at construction -> bake as compile-time constants.
        self.class_weights = tuple(float(v) for v in
                                   list(jnp.asarray(w, dtype=jnp.float32)))

    def __call__(self, score, target):
        return self.forward(score, target)

    def forward(self, score, target):
        # NUM_OUTPUTS == 1 / BALANCE_WEIGHTS == [1]  ->  single OHEM head.
        if NUM_OUTPUTS == 1:
            score = [score]
        weights = BALANCE_WEIGHTS
        assert len(weights) == len(score)
        functions = [self._ce_forward] * (len(weights) - 1) + [self._ohem_forward]
        return sum(w * fn(x, target) for w, x, fn in zip(weights, score, functions))

    def _prepared_maps(self, score, target):
        ph, pw = score.shape[2], score.shape[3]
        h, w = target.shape[1], target.shape[2]
        if (ph, pw) != (h, w):
            score = _bilinear_resize_align_corners(score, h, w)
        return _per_pixel_ce_and_prob(score, target, self.class_weights,
                                      self.ignore_label)

    def _ce_forward(self, score, target):
        # Matches nn.CrossEntropyLoss(weight, ignore_index, reduction='none'):
        # returns the per-pixel weighted CE map (0 at ignored pixels).
        # Only used when NUM_OUTPUTS > 1 (not the case here).
        loss_map, _ = self._prepared_maps(score, target)
        return loss_map.reshape(target.shape[0], target.shape[1], target.shape[2])

    def _ohem_forward(self, score, target):
        loss_map, prob_map = self._prepared_maps(score, target)
        loss_flat = loss_map.reshape(-1)
        prob_flat = prob_map.reshape(-1)

        n_valid = jnp.sum((target != self.ignore_label).astype(jnp.int32))

        # k-th smallest target-prob among valid pixels (invalid carry the 2.0
        # sentinel and never rank below a valid prob as long as k < n_valid).
        k = jnp.minimum(jnp.int32(self.min_kept), n_valid - 1)
        k = jnp.clip(k, 0, prob_flat.shape[0] - 1)
        min_value = _kth_smallest_nonneg_f32(prob_flat, k)
        threshold = jnp.maximum(min_value, jnp.float32(self.thresh))

        # TODO(synk): the count passes of the order statistic could be fused into
        # the CE kernel (per-tile partial counts) to avoid re-reading prob from HBM.
        sel = prob_flat < threshold                     # strict <, like reference
        num_sel = jnp.sum(sel.astype(jnp.float32))
        loss_sum = jnp.sum(jnp.where(sel, loss_flat, 0.0))
        return loss_sum / num_sel                       # mean over selected pixels


if __name__ == "__main__":
    key = jax.random.PRNGKey(0)
    k1, k2, k3, k4, k5 = jax.random.split(key, 5)

    N, C, H, W = 2, 11, 16, 16
    score = jax.random.normal(k1, (N, C, H, W), dtype=jnp.float32)
    labels = jax.random.randint(k2, (N, H, W), 0, C, dtype=jnp.int32)
    # Mark ~10% of pixels as ignore_label so the OHEM valid-mask path is exercised.
    drop = jax.random.uniform(k3, (N, H, W)) < 0.1
    labels = jnp.where(drop, jnp.int32(-1), labels)

    loss_fn = OhemCrossEntropyPallas()          # defaults: thres=0.7, min_kept=1e5
    loss = jax.block_until_ready(loss_fn(score, labels))
    assert jnp.isfinite(loss), "loss is not finite"

    # Exercise the bilinear-resize path and a ragged H*W (not a multiple of 128),
    # which uses the in-kernel tail masking / partial-block writeback path.
    score2 = jax.random.normal(k4, (N, C, 8, 8), dtype=jnp.float32)
    labels2 = jax.random.randint(k5, (N, 16, 15), 0, C, dtype=jnp.int32)
    loss2 = jax.block_until_ready(loss_fn(score2, labels2))
    assert jnp.isfinite(loss2), "ragged-shape loss is not finite"

    print("KERNEL_OK")
</pallas_src>

<mosaic_0001>
module attributes {stable_mosaic.version = 11 : i64} {
  func.func @_ohem_ce_kernel(%arg0: i32, %arg1: i32, %arg2: memref<1x11x256xf32, #tpu.memory_space<vmem>>, %arg3: memref<1x1x256xi32, #tpu.memory_space<vmem>>, %arg4: memref<1x1x256xf32, #tpu.memory_space<vmem>>, %arg5: memref<1x1x256xf32, #tpu.memory_space<vmem>>) attributes {dimension_semantics = [#tpu.dimension_semantics<parallel>, #tpu.dimension_semantics<parallel>], iteration_bounds = array<i64: 2, 1>, scalar_prefetch = 0 : i64, scratch_operands = 0 : i64, tpu.core_type = #tpu.core_type<tc>, window_params = [{transform_indices = @transform_0, window_bounds = array<i64: 1, 11, 256>}, {transform_indices = @transform_1, window_bounds = array<i64: 1, 1, 256>}, {transform_indices = @transform_2, window_bounds = array<i64: 1, 1, 256>}, {transform_indices = @transform_3, window_bounds = array<i64: 1, 1, 256>}]} {
    %c0 = arith.constant 0 : index
    %c0_0 = arith.constant 0 : index
    %c0_1 = arith.constant 0 : index
    %0 = vector.load %arg2[%c0, %c0_0, %c0_1] : memref<1x11x256xf32, #tpu.memory_space<vmem>>, vector<1x11x256xf32>
    %1 = vector.shape_cast %0 : vector<1x11x256xf32> to vector<11x256xf32>
    %c0_2 = arith.constant 0 : index
    %c0_3 = arith.constant 0 : index
    %c0_4 = arith.constant 0 : index
    %2 = vector.load %arg3[%c0_2, %c0_3, %c0_4] : memref<1x1x256xi32, #tpu.memory_space<vmem>>, vector<1x1x256xi32>
    %3 = vector.shape_cast %2 : vector<1x1x256xi32> to vector<1x256xi32>
    %4 = tpu.iota {dimensions = array<i32: 1>} : vector<1x256xi32>
    %c256_i32 = arith.constant 256 : i32
    %5 = arith.muli %arg1, %c256_i32 : i32
    %6 = vector.broadcast %5 : i32 to vector<1x256xi32>
    %7 = arith.addi %6, %4 : vector<1x256xi32>
    %c256_i32_5 = arith.constant 256 : i32
    %8 = vector.broadcast %c256_i32_5 : i32 to vector<1x256xi32>
    %9 = arith.cmpi slt, %7, %8 : vector<1x256xi32>
    %c-1_i32 = arith.constant -1 : i32
    %10 = vector.broadcast %c-1_i32 : i32 to vector<1x256xi32>
    %11 = arith.cmpi ne, %3, %10 : vector<1x256xi32>
    %12 = arith.andi %11, %9 : vector<1x256xi1>
    %c0_i32 = arith.constant 0 : i32
    %13 = vector.broadcast %c0_i32 : i32 to vector<1x256xi32>
    %14 = arith.select %12, %3, %13 : vector<1x256xi1>, vector<1x256xi32>
    %15 = tpu.iota {dimensions = array<i32: 0>} : vector<11x256xi32>
    %16 = vector.broadcast %14 : vector<1x256xi32> to vector<11x256xi32>
    %17 = arith.cmpi eq, %15, %16 : vector<11x256xi32>
    %cst = arith.constant dense<0xFF800000> : vector<256xf32>
    %18 = vector.multi_reduction <maximumf>, %1, %cst [0] : vector<11x256xf32> to vector<256xf32>
    %19 = vector.shape_cast %18 : vector<256xf32> to vector<1x256xf32>
    %20 = vector.broadcast %19 : vector<1x256xf32> to vector<11x256xf32>
    %21 = arith.subf %1, %20 : vector<11x256xf32>
    %22 = math.exp %21 : vector<11x256xf32>
    %cst_6 = arith.constant dense<0.000000e+00> : vector<256xf32>
    %23 = vector.multi_reduction <add>, %22, %cst_6 [0] : vector<11x256xf32> to vector<256xf32>
    %24 = vector.shape_cast %23 : vector<256xf32> to vector<1x256xf32>
    %cst_7 = arith.constant 0.000000e+00 : f32
    %25 = vector.broadcast %cst_7 : f32 to vector<11x256xf32>
    %26 = arith.select %17, %1, %25 : vector<11x256xi1>, vector<11x256xf32>
    %cst_8 = arith.constant dense<0.000000e+00> : vector<256xf32>
    %27 = vector.multi_reduction <add>, %26, %cst_8 [0] : vector<11x256xf32> to vector<256xf32>
    %28 = vector.shape_cast %27 : vector<256xf32> to vector<1x256xf32>
    %cst_9 = arith.constant 0.000000e+00 : f32
    %29 = vector.broadcast %cst_9 : f32 to vector<11x256xf32>
    %30 = arith.select %17, %22, %29 : vector<11x256xi1>, vector<11x256xf32>
    %cst_10 = arith.constant dense<0.000000e+00> : vector<256xf32>
    %31 = vector.multi_reduction <add>, %30, %cst_10 [0] : vector<11x256xf32> to vector<256xf32>
    %32 = vector.shape_cast %31 : vector<256xf32> to vector<1x256xf32>
    %33 = arith.subf %19, %28 : vector<1x256xf32>
    %34 = math.log %24 : vector<1x256xf32>
    %35 = arith.addf %33, %34 : vector<1x256xf32>
    %36 = arith.divf %32, %24 : vector<1x256xf32>
    %cst_11 = arith.constant 1.000000e+00 : f32
    %37 = vector.broadcast %cst_11 : f32 to vector<1x256xf32>
    %c1_i32 = arith.constant 1 : i32
    %38 = vector.broadcast %c1_i32 : i32 to vector<1x256xi32>
    %39 = arith.cmpi eq, %14, %38 : vector<1x256xi32>
    %cst_12 = arith.constant 2.24389601 : f32
    %40 = vector.broadcast %cst_12 : f32 to vector<1x256xf32>
    %41 = arith.select %39, %40, %37 : vector<1x256xi1>, vector<1x256xf32>
    %c2_i32 = arith.constant 2 : i32
    %42 = vector.broadcast %c2_i32 : i32 to vector<1x256xi32>
    %43 = arith.cmpi eq, %14, %42 : vector<1x256xi32>
    %cst_13 = arith.constant 1.03673685 : f32
    %44 = vector.broadcast %cst_13 : f32 to vector<1x256xf32>
    %45 = arith.select %43, %44, %41 : vector<1x256xi1>, vector<1x256xf32>
    %c3_i32 = arith.constant 3 : i32
    %46 = vector.broadcast %c3_i32 : i32 to vector<1x256xi32>
    %47 = arith.cmpi eq, %14, %46 : vector<1x256xi32>
    %cst_14 = arith.constant 3.68462038 : f32
    %48 = vector.broadcast %cst_14 : f32 to vector<1x256xf32>
    %49 = arith.select %47, %48, %45 : vector<1x256xi1>, vector<1x256xf32>
    %c4_i32 = arith.constant 4 : i32
    %50 = vector.broadcast %c4_i32 : i32 to vector<1x256xi32>
    %51 = arith.cmpi eq, %14, %50 : vector<1x256xi32>
    %cst_15 = arith.constant 3.84460044 : f32
    %52 = vector.broadcast %cst_15 : f32 to vector<1x256xf32>
    %53 = arith.select %51, %52, %49 : vector<1x256xi1>, vector<1x256xf32>
    %c5_i32 = arith.constant 5 : i32
    %54 = vector.broadcast %c5_i32 : i32 to vector<1x256xi32>
    %55 = arith.cmpi eq, %14, %54 : vector<1x256xi32>
    %cst_16 = arith.constant 3.76143265 : f32
    %56 = vector.broadcast %cst_16 : f32 to vector<1x256xf32>
    %57 = arith.select %55, %56, %53 : vector<1x256xi1>, vector<1x256xf32>
    %c6_i32 = arith.constant 6 : i32
    %58 = vector.broadcast %c6_i32 : i32 to vector<1x256xi32>
    %59 = arith.cmpi eq, %14, %58 : vector<1x256xi32>
    %cst_17 = arith.constant 2.13888907 : f32
    %60 = vector.broadcast %cst_17 : f32 to vector<1x256xf32>
    %61 = arith.select %59, %60, %57 : vector<1x256xi1>, vector<1x256xf32>
    %c7_i32 = arith.constant 7 : i32
    %62 = vector.broadcast %c7_i32 : i32 to vector<1x256xi32>
    %63 = arith.cmpi eq, %14, %62 : vector<1x256xi32>
    %cst_18 = arith.constant 2.97246361 : f32
    %64 = vector.broadcast %cst_18 : f32 to vector<1x256xf32>
    %65 = arith.select %63, %64, %61 : vector<1x256xi1>, vector<1x256xf32>
    %c8_i32 = arith.constant 8 : i32
    %66 = vector.broadcast %c8_i32 : i32 to vector<1x256xi32>
    %67 = arith.cmpi eq, %14, %66 : vector<1x256xi32>
    %cst_19 = arith.constant 1.23256028 : f32
    %68 = vector.broadcast %cst_19 : f32 to vector<1x256xf32>
    %69 = arith.select %67, %68, %65 : vector<1x256xi1>, vector<1x256xf32>
    %c9_i32 = arith.constant 9 : i32
    %70 = vector.broadcast %c9_i32 : i32 to vector<1x256xi32>
    %71 = arith.cmpi eq, %14, %70 : vector<1x256xi32>
    %cst_20 = arith.constant 6.03968334 : f32
    %72 = vector.broadcast %cst_20 : f32 to vector<1x256xf32>
    %73 = arith.select %71, %72, %69 : vector<1x256xi1>, vector<1x256xf32>
    %c10_i32 = arith.constant 10 : i32
    %74 = vector.broadcast %c10_i32 : i32 to vector<1x256xi32>
    %75 = arith.cmpi eq, %14, %74 : vector<1x256xi32>
    %cst_21 = arith.constant 5.00293922 : f32
    %76 = vector.broadcast %cst_21 : f32 to vector<1x256xf32>
    %77 = arith.select %75, %76, %73 : vector<1x256xi1>, vector<1x256xf32>
    %78 = arith.mulf %35, %77 : vector<1x256xf32>
    %cst_22 = arith.constant 0.000000e+00 : f32
    %79 = vector.broadcast %cst_22 : f32 to vector<1x256xf32>
    %80 = arith.select %12, %78, %79 : vector<1x256xi1>, vector<1x256xf32>
    %c0_23 = arith.constant 0 : index
    %c0_24 = arith.constant 0 : index
    %c0_25 = arith.constant 0 : index
    %81 = vector.load %arg4[%c0_23, %c0_24, %c0_25] : memref<1x1x256xf32, #tpu.memory_space<vmem>>, vector<1x1x256xf32>
    %82 = vector.shape_cast %81 : vector<1x1x256xf32> to vector<1x256xf32>
    %83 = vector.shape_cast %80 : vector<1x256xf32> to vector<1x1x256xf32>
    tpu.vector_store %arg4[%c0_23, %c0_24, %c0_25], %83 {strides = array<i32>} : memref<1x1x256xf32, #tpu.memory_space<vmem>>, vector<1x1x256xf32>,
    %cst_26 = arith.constant 2.000000e+00 : f32
    %84 = vector.broadcast %cst_26 : f32 to vector<1x256xf32>
    %85 = arith.select %12, %36, %84 : vector<1x256xi1>, vector<1x256xf32>
    %c0_27 = arith.constant 0 : index
    %c0_28 = arith.constant 0 : index
    %c0_29 = arith.constant 0 : index
    %86 = vector.load %arg5[%c0_27, %c0_28, %c0_29] : memref<1x1x256xf32, #tpu.memory_space<vmem>>, vector<1x1x256xf32>
    %87 = vector.shape_cast %86 : vector<1x1x256xf32> to vector<1x256xf32>
    %88 = vector.shape_cast %85 : vector<1x256xf32> to vector<1x1x256xf32>
    tpu.vector_store %arg5[%c0_27, %c0_28, %c0_29], %88 {strides = array<i32>} : memref<1x1x256xf32, #tpu.memory_space<vmem>>, vector<1x1x256xf32>,
    return
  }
  func.func @transform_0(%arg0: i32, %arg1: i32) -> (i32, i32, i32) {
    %c0_i32 = arith.constant 0 : i32
    %c0_i32_0 = arith.constant 0 : i32
    return %arg0, %c0_i32, %arg1 : i32, i32, i32
  }
  func.func @transform_1(%arg0: i32, %arg1: i32) -> (i32, i32, i32) {
    %c0_i32 = arith.constant 0 : i32
    %c0_i32_0 = arith.constant 0 : i32
    return %arg0, %c0_i32, %arg1 : i32, i32, i32
  }
  func.func @transform_2(%arg0: i32, %arg1: i32) -> (i32, i32, i32) {
    %c0_i32 = arith.constant 0 : i32
    %c0_i32_0 = arith.constant 0 : i32
    return %arg0, %c0_i32, %arg1 : i32, i32, i32
  }
  func.func @transform_3(%arg0: i32, %arg1: i32) -> (i32, i32, i32) {
    %c0_i32 = arith.constant 0 : i32
    %c0_i32_0 = arith.constant 0 : i32
    return %arg0, %c0_i32, %arg1 : i32, i32, i32
  }
}

</mosaic_0001>

<llo_original>
// kernel: tpu_custom_call.1
$region0: #{tpu_custom_call.1}
  #allocation0 [shape = 'u32[]', space=smem, size = 0x4, offset = 0x4, fixed_abs, tag = 'smem constant byte address 0x4 - core index']
  #allocation1 [shape = 'u32[144,128]{1,0:T(1,128)}', space=vmem, size = 0x12000, scoped, tag = 'internal scratch']
  %s0 = inlined_call_operand.vmem [shape: f32[2,11,256], index: 0, kind: input, shape index: {}]
  %s1 = inlined_call_operand.vmem [shape: s32[2,1,256], index: 1, kind: input, shape index: {}]
  %s2 = inlined_call_operand.hbm [shape: f32[2,1,256], index: 2, kind: output, shape index: {0}]
  %s3 = inlined_call_operand.hbm [shape: f32[2,1,256], index: 3, kind: output, shape index: {1}]
  %4 = xla_tuple %s2, %s3
  %s5 = sld [smem:[#allocation0]]
  $region49: #{tpu_custom_call.1} parent=0
    _
  %s7 = ssub.s32 1, %s5
  %s8 = scalar_select 0, %s7, %s5
  $region1: #{tpu_custom_call.1} parent=0
    #allocation2 [shape = 'u8[2048]{0}', space=vmem, size = 0x800, scoped, tag = 'output window, operand 0']
    #allocation3 [shape = 's32[2]{0}', space=sflag, size = 0x8, scoped, tag = 'scoped memory for tpu_custom_call.1']
    #allocation4 [shape = 'u8[2048]{0}', space=vmem, size = 0x800, scoped, tag = 'output window, operand 1']
    #allocation5 [shape = 's32[2]{0}', space=sflag, size = 0x8, scoped, tag = 'scoped memory for tpu_custom_call.1']
    %9 = vsyncpa [#allocation3], 0
    %s10 = scalar_lea.sflag [#allocation3], 1
    %11 = vsyncpa %s10, 0
    %12 = vsyncpa [#allocation5], 0
    %s13 = scalar_lea.sflag [#allocation5], 1
    %14 = vsyncpa %s13, 0
    loop: start=0, step=1, limit=4
    $region2: #{tpu_custom_call.1} parent=1 // loop_pre_header
      _
    $region3: #{tpu_custom_call.1} parent=1 // loop_header
      %s16 = sphi 0, %s20
      %p17 = scmp.ge.s32.totalorder %s16, 4
      %s23 = sphi 0, %s35
      %s24 = sphi 0, %s31
      %s25 = sphi 0, %s23
      %s26 = sphi 0, %s24
      %s27 = sphi 0, %s25
      %s28 = sphi 0, %s26
      %s40 = sphi 0, %s42
      %s43 = sphi 0, %s40
      %s44 = sphi 0, %s43
      %s60 = sphi 0, %s44
      %s68 = sphi 0, %s70
      %s71 = sphi 0, %s68
      %s72 = sphi 0, %s71
      %s88 = sphi 0, %s72
      %s96 = sphi 0, %s98
      %s99 = sphi 0, %s96
      %s100 = sphi 0, %s99
      %s116 = sphi 0, %s100
      %s124 = sphi 0, %s126
      %s127 = sphi 0, %s124
      %s128 = sphi 0, %s127
      %s144 = sphi 0, %s128
    $region4: #{tpu_custom_call.1} parent=1 // loop_header_branch
      %19 = sbr.rel (%p17) target = $region8
    $region5: #{tpu_custom_call.1} parent=1 // loop_body
      %s21 = ssub.s32 %s16, 1
      %s22 = ssub.s32 %s16, 2
      %s29 = sadd.s32 1, %s24
      %p30 = scmp.ge.s32.totalorder %s29, 1
      %s31 = scalar_select %p30, 0, %s29
      %s32 = sadd.s32 1, %s23
      %s33 = scalar_select %p30, %s32, %s23
      %p34 = scmp.ge.s32.totalorder %s33, 2
      %s35 = scalar_select %p34, 0, %s33
      %s36 = ssub.s32 %s23, %s35
      %s37 = ssub.s32 %s24, %s31
      %s38 = sor.u32 %s36, %s37
      %p39 = scmp.eq.s32.totalorder %s38, 0
      %s41 = sadd.s32 %s40, 1
      %s42 = scalar_select %p39, %s40, %s41
      %p45 = pneg %p39
      %p46 = scmp.eq.s32.totalorder %s16, 1
      %p47 = por %p45, %p46
      %p48 = scmp.ne.s32.totalorder %s40, %s43
      %p49 = scmp.eq.s32.totalorder %s16, 0
      %p50 = por %p48, %p49
      %p51 = scmp.ne.s32.totalorder %s40, %s43
      %p52 = scmp.eq.s32.totalorder %s21, 1
      %p53 = por %p51, %p52
      %p54 = scmp.ne.s32.totalorder %s43, %s44
      %p55 = scmp.eq.s32.totalorder %s21, 0
      %p56 = por %p54, %p55
      %p57 = scmp.ne.s32.totalorder %s43, %s44
      %p58 = scmp.eq.s32.totalorder %s22, 1
      %p59 = por %p57, %p58
      %p61 = scmp.ne.s32.totalorder %s44, %s60
      %p62 = scmp.eq.s32.totalorder %s22, 0
      %p63 = por %p61, %p62
      %s64 = ssub.s32 %s23, %s35
      %s65 = ssub.s32 %s24, %s31
      %s66 = sor.u32 %s64, %s65
      %p67 = scmp.eq.s32.totalorder %s66, 0
      %s69 = sadd.s32 %s68, 1
      %s70 = scalar_select %p67, %s68, %s69
      %p73 = pneg %p67
      %p74 = scmp.eq.s32.totalorder %s16, 1
      %p75 = por %p73, %p74
      %p76 = scmp.ne.s32.totalorder %s68, %s71
      %p77 = scmp.eq.s32.totalorder %s16, 0
      %p78 = por %p76, %p77
      %p79 = scmp.ne.s32.totalorder %s68, %s71
      %p80 = scmp.eq.s32.totalorder %s21, 1
      %p81 = por %p79, %p80
      %p82 = scmp.ne.s32.totalorder %s71, %s72
      %p83 = scmp.eq.s32.totalorder %s21, 0
      %p84 = por %p82, %p83
      %p85 = scmp.ne.s32.totalorder %s71, %s72
      %p86 = scmp.eq.s32.totalorder %s22, 1
      %p87 = por %p85, %p86
      %p89 = scmp.ne.s32.totalorder %s72, %s88
      %p90 = scmp.eq.s32.totalorder %s22, 0
      %p91 = por %p89, %p90
      %s92 = ssub.s32 %s23, %s35
      %s93 = ssub.s32 %s24, %s31
      %s94 = sor.u32 %s92, %s93
      %p95 = scmp.eq.s32.totalorder %s94, 0
      %s97 = sadd.s32 %s96, 1
      %s98 = scalar_select %p95, %s96, %s97
      %p101 = pneg %p95
      %p102 = scmp.eq.s32.totalorder %s16, 1
      %p103 = por %p101, %p102
      %p104 = scmp.ne.s32.totalorder %s96, %s99
      %p105 = scmp.eq.s32.totalorder %s16, 0
      %p106 = por %p104, %p105
      %p107 = scmp.ne.s32.totalorder %s96, %s99
      %p108 = scmp.eq.s32.totalorder %s21, 1
      %p109 = por %p107, %p108
      %p110 = scmp.ne.s32.totalorder %s99, %s100
      %p111 = scmp.eq.s32.totalorder %s21, 0
      %p112 = por %p110, %p111
      %p113 = scmp.ne.s32.totalorder %s99, %s100
      %p114 = scmp.eq.s32.totalorder %s22, 1
      %p115 = por %p113, %p114
      %p117 = scmp.ne.s32.totalorder %s100, %s116
      %p118 = scmp.eq.s32.totalorder %s22, 0
      %p119 = por %p117, %p118
      %s120 = ssub.s32 %s23, %s35
      %s121 = ssub.s32 %s24, %s31
      %s122 = sor.u32 %s120, %s121
      %p123 = scmp.eq.s32.totalorder %s122, 0
      %s125 = sadd.s32 %s124, 1
      %s126 = scalar_select %p123, %s124, %s125
      %p129 = pneg %p123
      %p130 = scmp.eq.s32.totalorder %s16, 1
      %p131 = por %p129, %p130
      %p132 = scmp.ne.s32.totalorder %s124, %s127
      %p133 = scmp.eq.s32.totalorder %s16, 0
      %p134 = por %p132, %p133
      %p135 = scmp.ne.s32.totalorder %s124, %s127
      %p136 = scmp.eq.s32.totalorder %s21, 1
      %p137 = por %p135, %p136
      %p138 = scmp.ne.s32.totalorder %s127, %s128
      %p139 = scmp.eq.s32.totalorder %s21, 0
      %p140 = por %p138, %p139
      %p141 = scmp.ne.s32.totalorder %s127, %s128
      %p142 = scmp.eq.s32.totalorder %s22, 1
      %p143 = por %p141, %p142
      %p145 = scmp.ne.s32.totalorder %s128, %s144
      %p146 = scmp.eq.s32.totalorder %s22, 0
      %p147 = por %p145, %p146
      %p148 = scmp.le.s32.totalorder 1, %s16
      %p149 = scmp.lt.s32.totalorder %s16, 3
      %p150 = pnand %p148, %p149
      %p151 = pneg %p150
      // Predicated region
      $region9: #{tpu_custom_call.1} parent=5 // pred_check
        _
      $region10: #{tpu_custom_call.1} parent=5 // pred_check_branch
        %153 = sbr.rel (%p150) target = $region12
      $region11: #{tpu_custom_call.1} parent=5 // pred_region
        %s154 = ssub.s32 %s16, 1
      $region12: #{tpu_custom_call.1} parent=5 // pred_fallthru
        _
      %p155 = scmp.lt.s32.totalorder %s16, 2
      // Predicated region
      $region13: #{tpu_custom_call.1} parent=5 // pred_check
        %p156 = pneg %p155
      $region14: #{tpu_custom_call.1} parent=5 // pred_check_branch
        %158 = sbr.rel (%p156) target = $region16
      $region15: #{tpu_custom_call.1} parent=5 // pred_region
        // Predicated region
        $region17: #{tpu_custom_call.1} parent=15 // pred_check
          %p159 = pneg %p50
        $region18: #{tpu_custom_call.1} parent=15 // pred_check_branch
          %161 = sbr.rel (%p159) target = $region20
        $region19: #{tpu_custom_call.1} parent=15 // pred_region
          %s162 = smul.u32 2, %s24
          %p163 = scmp.lt.s32.totalorder %s23, 1
          %s164 = scalar_select %p163, %s23, 1
          %p165 = scmp.lt.s32.totalorder %s162, 1
          %s166 = scalar_select %p165, %s162, 1
          %s167 = smul.addr %s164, 4
          %s168 = sadd.s32 %s166, %s167
          %s169 = smul.addr %s168, 8
          %s170 = scalar_lea.vmem %s0, %s169
          %s171 = smul.u32 2, %s24
        $region20: #{tpu_custom_call.1} parent=15 // pred_fallthru
          _
        // Predicated region
        $region21: #{tpu_custom_call.1} parent=15 // pred_check
          %p172 = pneg %p78
        $region22: #{tpu_custom_call.1} parent=15 // pred_check_branch
          %174 = sbr.rel (%p172) target = $region24
        $region23: #{tpu_custom_call.1} parent=15 // pred_region
          %s175 = smul.u32 2, %s24
          %p176 = scmp.lt.s32.totalorder %s23, 1
          %s177 = scalar_select %p176, %s23, 1
          %p178 = scmp.lt.s32.totalorder %s175, 1
          %s179 = scalar_select %p178, %s175, 1
          %s180 = smul.addr %s177, 2
          %s181 = sadd.s32 %s179, %s180
          %s182 = scalar_lea.vmem %s1, %s181
          %s183 = smul.u32 2, %s24
        $region24: #{tpu_custom_call.1} parent=15 // pred_fallthru
          _
      $region16: #{tpu_custom_call.1} parent=5 // pred_fallthru
        _
      %p184 = scmp.le.s32.totalorder 1, %s16
      %p185 = scmp.lt.s32.totalorder %s16, 3
      %p186 = pnand %p184, %p185
      %p187 = pneg %p186
      // Predicated region
      $region25: #{tpu_custom_call.1} parent=5 // pred_check
        _
      $region26: #{tpu_custom_call.1} parent=5 // pred_check_branch
        %189 = sbr.rel (%p186) target = $region28
      $region27: #{tpu_custom_call.1} parent=5 // pred_region
        %s190 = ssub.s32 %s16, 1
        %s191 = smul.u32 2, %s26
        %p192 = scmp.lt.s32.totalorder %s25, 1
        %s193 = scalar_select %p192, %s25, 1
        %p194 = scmp.lt.s32.totalorder %s191, 1
        %s195 = scalar_select %p194, %s191, 1
        %s196 = smul.addr %s193, 4
        %s197 = sadd.s32 %s195, %s196
        %s198 = smul.addr %s197, 8
        %s199 = scalar_lea.vmem %s0, %s198
        %p200 = pneg %p56
        %p201 = pneg %p53
        %s202 = smul.u32 2, %s26
        %p203 = scmp.lt.s32.totalorder %s25, 1
        %s204 = scalar_select %p203, %s25, 1
        %p205 = scmp.lt.s32.totalorder %s202, 1
        %s206 = scalar_select %p205, %s202, 1
        %s207 = smul.addr %s204, 2
        %s208 = sadd.s32 %s206, %s207
        %s209 = scalar_lea.vmem %s1, %s208
        %p210 = pneg %p84
        %p211 = pneg %p81
        %p212 = pneg %p112
        %p213 = pneg %p109
        %s214 = sand.u32 %s99, 1
        %s215 = scalar_lea.sflag [#allocation3], %s214
        %s216 = sand.u32 %s99, 1
        %s217 = smul.addr %s216, 2
        %s218 = scalar_lea.vmem [#allocation2], %s217
        %p219 = pneg %p140
        %p220 = pneg %p137
        %s221 = sand.u32 %s127, 1
        %s222 = scalar_lea.sflag [#allocation5], %s221
        %s223 = sand.u32 %s127, 1
        %s224 = smul.addr %s223, 2
        %s225 = scalar_lea.vmem [#allocation4], %s224
        %s226 = smul.u32 2, %s26
        %p227 = scmp.lt.s32.totalorder %s25, 1
        %s228 = scalar_select %p227, %s25, 1
        %p229 = scmp.lt.s32.totalorder %s226, 1
        %s230 = scalar_select %p229, %s226, 1
        %s231 = smul.addr %s228, 4
        %s232 = sadd.s32 %s230, %s231
        %s233 = smul.addr %s232, 8
        %s234 = scalar_lea.vmem %s0, %s233
        %s235 = smul.u32 2, %s26
        %s236 = smul.u32 2, %s26
        %p237 = scmp.lt.s32.totalorder %s25, 1
        %s238 = scalar_select %p237, %s25, 1
        %p239 = scmp.lt.s32.totalorder %s236, 1
        %s240 = scalar_select %p239, %s236, 1
        %s241 = smul.addr %s238, 2
        %s242 = sadd.s32 %s240, %s241
        %s243 = scalar_lea.vmem %s1, %s242
        %s244 = smul.u32 2, %s26
        %s245 = smul.u32 2, %s26
        %s246 = smul.u32 2, %s26
        %v247 = vld [vmem:[%s234] sm:$0xff]
        %v248 = vld [vmem:[%s234 + $0x8] sm:$0xff]
        %v249 = vld [vmem:[%s234 + $0x10] sm:$0x7]
        %v250 = vld [vmem:[%s234 + $0x18] sm:$0x7]
        %v251 = vld [vmem:[%s243] sm:$0x3]
        %v252 = vlaneseq
        %v253 = vand.u32 %v252, 127
        %v254 = vadd.s32 %v253, 128
        %s255 = smul.u32 %s26, 256
        %v256 = vstv %s255
        %v257 = vadd.s32 %v256, %v253
        %v258 = vadd.s32 %v256, %v254
        %vm259 = vcmp.lt.s32.totalorder %v257, 256
        %vm260 = vcmp.lt.s32.totalorder %v258, 256
        %vm261 = vcmp.ne.s32.totalorder %v251, 4294967295
        %v262 = vsel %vm259, 1, 0
        %v263 = vsel %vm260, 1, 0
        %v264 = vcombine.low %v262, %v263
        %v266 = vunpack.c.l.s4 1966171168
        %v267 = vunpack.c.0.s8 %v266
        %v268 = vlaneseq
        %v269 = vshrl.u32 %v268, 7
        %v270 = vsub.s32 %v267, %v269
        %v271 = vrot.slane %v264, %v270
        %v273 = vunpack.c.l.s4 1966171168
        %v274 = vunpack.c.0.s8 %v273
        %v275 = vlaneseq
        %v276 = vshrl.u32 %v275, 7
        %v277 = vsub.s32 %v274, %v276
        %v278 = vrot.slane %v271, %v277
        %vm279 = vcmp.ne.s32.totalorder %v278, 0
        %vm280 = vmand %vm261, %vm279
        %v281 = vsel %vm280, %v251, 0
        %v282 = vlaneseq
        %v283 = vshrl.u32 %v282, 7
        %v284 = vadd.s32 %v283, 8
        %v285 = vlaneseq
        %v286 = vshrl.u32 %v285, 7
        %v287 = vsub.s32 0, %v286
        %v288 = vrot.slane %v281, %v287
        %v289 = vlaneseq
        %v290 = vshrl.u32 %v289, 7
        %v291 = vsub.s32 1, %v290
        %v292 = vrot.slane %v281, %v291
        %vm293 = vcmp.eq.s32.totalorder %v283, %v288
        %vm294 = vcmp.eq.s32.totalorder %v283, %v292
        %vm295 = vcmp.eq.s32.totalorder %v284, %v288
        %vm296 = vcmp.eq.s32.totalorder %v284, %v292
        %vm297 = vcmask 1042432
        %v298 = vsel %vm297, %v249, -inf
        %v299 = vmax.f32 %v247, %v298
        %v300 = vrot.slane %v299, 4
        %v301 = vmax.f32 %v299, %v300
        %v302 = vrot.slane %v301, 2
        %v303 = vmax.f32 %v301, %v302
        %v304 = vrot.slane %v303, 1
        %v305 = vmax.f32 %v303, %v304
        %v306 = vsel %vm297, %v250, -inf
        %v307 = vmax.f32 %v248, %v306
        %v308 = vrot.slane %v307, 4
        %v309 = vmax.f32 %v307, %v308
        %v310 = vrot.slane %v309, 2
        %v311 = vmax.f32 %v309, %v310
        %v312 = vrot.slane %v311, 1
        %v313 = vmax.f32 %v311, %v312
        %v314 = vsub.f32 %v247, %v305
        %v315 = vsub.f32 %v248, %v313
        %v316 = vsub.f32 %v249, %v305
        %v317 = vsub.f32 %v250, %v313
        %v318 = vmul.f32 %v314, 1.442695
        %v319 = vpow.pop %v318
        %v320 = vmul.f32 %v315, 1.442695
        %v321 = vpow.pop %v320
        %v322 = vmul.f32 %v316, 1.442695
        %v323 = vpow.pop %v322
        %v324 = vmul.f32 %v317, 1.442695
        %v325 = vpow.pop %v324
        %v326 = vsel %vm297, %v323, 0.0
        %v327 = vadd.f32 %v319, %v326
        %v328 = vrot.slane %v327, 4
        %v329 = vadd.f32 %v327, %v328
        %v330 = vrot.slane %v329, 2
        %v331 = vadd.f32 %v329, %v330
        %v332 = vrot.slane %v331, 1
        %v333 = vadd.f32 %v331, %v332
        %v334 = vsel %vm297, %v325, 0.0
        %v335 = vadd.f32 %v321, %v334
        %v336 = vrot.slane %v335, 4
        %v337 = vadd.f32 %v335, %v336
        %v338 = vrot.slane %v337, 2
        %v339 = vadd.f32 %v337, %v338
        %v340 = vrot.slane %v339, 1
        %v341 = vadd.f32 %v339, %v340
        %v342 = vsel %vm293, %v247, 0.0
        %v343 = vsel %vm294, %v248, 0.0
        %v344 = vsel %vm295, %v249, 0.0
        %v345 = vsel %vm296, %v250, 0.0
        %v346 = vsel %vm297, %v344, 0.0
        %v347 = vadd.f32 %v342, %v346
        %v348 = vrot.slane %v347, 4
        %v349 = vadd.f32 %v347, %v348
        %v350 = vrot.slane %v349, 2
        %v351 = vadd.f32 %v349, %v350
        %v352 = vrot.slane %v351, 1
        %v353 = vadd.f32 %v351, %v352
        %v354 = vsel %vm297, %v345, 0.0
        %v355 = vadd.f32 %v343, %v354
        %v356 = vrot.slane %v355, 4
        %v357 = vadd.f32 %v355, %v356
        %v358 = vrot.slane %v357, 2
        %v359 = vadd.f32 %v357, %v358
        %v360 = vrot.slane %v359, 1
        %v361 = vadd.f32 %v359, %v360
        %v362 = vsel %vm293, %v319, 0.0
        %v363 = vsel %vm294, %v321, 0.0
        %v364 = vsel %vm295, %v323, 0.0
        %v365 = vsel %vm296, %v325, 0.0
        %v366 = vsel %vm297, %v364, 0.0
        %v367 = vadd.f32 %v362, %v366
        %v368 = vrot.slane %v367, 4
        %v369 = vadd.f32 %v367, %v368
        %v370 = vrot.slane %v369, 2
        %v371 = vadd.f32 %v369, %v370
        %v372 = vrot.slane %v371, 1
        %v373 = vadd.f32 %v371, %v372
        %v374 = vsel %vm297, %v365, 0.0
        %v375 = vadd.f32 %v363, %v374
        %v376 = vrot.slane %v375, 4
        %v377 = vadd.f32 %v375, %v376
        %v378 = vrot.slane %v377, 2
        %v379 = vadd.f32 %v377, %v378
        %v380 = vrot.slane %v379, 1
        %v381 = vadd.f32 %v379, %v380
        %v382 = vsub.f32 %v305, %v353
        %v383 = vsub.f32 %v313, %v361
        %v384 = vlog2.pop %v333
        %v385 = vmul.f32 %v384, 0.6931472
        %v386 = vlog2.pop %v341
        %v387 = vmul.f32 %v386, 0.6931472
        %v388 = vadd.f32 %v382, %v385
        %v389 = vadd.f32 %v383, %v387
        %v390 = vrcp.pop %v333
        %v391 = vmul.f32 %v373, %v390
        %v392 = vrcp.pop %v341
        %v393 = vmul.f32 %v381, %v392
        %vm394 = vcmp.eq.s32.totalorder %v281, 1
        %v395 = vsel %vm394, 2.243896, 1.0
        %vm396 = vcmp.eq.s32.totalorder %v281, 2
        %v397 = vsel %vm396, 1.0367368, %v395
        %vm398 = vcmp.eq.s32.totalorder %v281, 3
        %v399 = vsel %vm398, 3.6846204, %v397
        %vm400 = vcmp.eq.s32.totalorder %v281, 4
        %v401 = vsel %vm400, 3.8446004, %v399
        %vm402 = vcmp.eq.s32.totalorder %v281, 5
        %v403 = vsel %vm402, 3.7614326, %v401
        %vm404 = vcmp.eq.s32.totalorder %v281, 6
        %v405 = vsel %vm404, 2.138889, %v403
        %vm406 = vcmp.eq.s32.totalorder %v281, 7
        %v407 = vsel %vm406, 2.9724636, %v405
        %vm408 = vcmp.eq.s32.totalorder %v281, 8
        %v409 = vsel %vm408, 1.2325603, %v407
        %vm410 = vcmp.eq.s32.totalorder %v281, 9
        %v411 = vsel %vm410, 6.0396833, %v409
        %vm412 = vcmp.eq.s32.totalorder %v281, 10
        %v413 = vsel %vm412, 5.002939, %v411
        %v415 = vlaneseq
        %v416 = vshrl.u32 %v415, 7
        %v417 = vsub.s32 0, %v416
        %v418 = vrot.slane %v413, %v417
        %v419 = vlaneseq
        %v420 = vshrl.u32 %v419, 7
        %v421 = vsub.s32 1, %v420
        %v422 = vrot.slane %v413, %v421
        %v425 = vmul.f32 %v388, %v418
        %v426 = vmul.f32 %v389, %v422
        %v429 = vcombine.low %v425, %v426
        %v431 = vunpack.c.l.s4 1966171168
        %v432 = vunpack.c.0.s8 %v431
        %v433 = vlaneseq
        %v434 = vshrl.u32 %v433, 7
        %v435 = vsub.s32 %v432, %v434
        %v436 = vrot.slane %v429, %v435
        %v438 = vunpack.c.l.s4 1966171168
        %v439 = vunpack.c.0.s8 %v438
        %v440 = vlaneseq
        %v441 = vshrl.u32 %v440, 7
        %v442 = vsub.s32 %v439, %v441
        %v443 = vrot.slane %v436, %v442
        %v445 = vsel %vm280, %v443, 0.0
        %v446 = vlaneseq
        %vm447 = vcmp.ge.s32.totalorder %v446, 0
        %vm448 = vcmp.lt.s32.totalorder %v446, 256
        %vm449 = vmand %vm447, %vm448
        %450 = vst.msk [vmem:[%s218] sm:$0x3] %vm449, %v445
        %v453 = vcombine.low %v391, %v393
        %v455 = vunpack.c.l.s4 1966171168
        %v456 = vunpack.c.0.s8 %v455
        %v457 = vlaneseq
        %v458 = vshrl.u32 %v457, 7
        %v459 = vsub.s32 %v456, %v458
        %v460 = vrot.slane %v453, %v459
        %v462 = vunpack.c.l.s4 1966171168
        %v463 = vunpack.c.0.s8 %v462
        %v464 = vlaneseq
        %v465 = vshrl.u32 %v464, 7
        %v466 = vsub.s32 %v463, %v465
        %v467 = vrot.slane %v460, %v466
        %v469 = vsel %vm280, %v467, 2.0
        %470 = vst.msk [vmem:[%s225] sm:$0x3] %vm449, %v469
        %s471 = sand.u32 %s99, 1
        %s472 = scalar_lea.sflag [#allocation3], %s471
        %s473 = sand.u32 %s99, 1
        %s474 = smul.addr %s473, 2
        %s475 = scalar_lea.vmem [#allocation2], %s474
        %s476 = sand.u32 %s127, 1
        %s477 = scalar_lea.sflag [#allocation5], %s476
        %s478 = sand.u32 %s127, 1
        %s479 = smul.addr %s478, 2
        %s480 = scalar_lea.vmem [#allocation4], %s479
        // Predicated region
        $region29: #{tpu_custom_call.1} parent=27 // pred_check
          %p481 = pneg %p109
        $region30: #{tpu_custom_call.1} parent=27 // pred_check_branch
          %483 = sbr.rel (%p481) target = $region32
        $region31: #{tpu_custom_call.1} parent=27 // pred_region
          %s484 = smul.u32 2, %s26
          %s486 = ssub.s32 32, 32
          %487 = vsyncadd %s472, %s486
          %s488 = smul.addr %s25, 2
          %s489 = sadd.s32 %s484, %s488
          %s490 = smul.addr %s489, 16
          %s491 = scalar_lea.hbm %s2, %s490
          %s493 = sshll.u32 %s475, 4
          %s494 = int_to_ptr.vmem [resolvable:$true] %s493
          %496 = dma.vmem_to_hbm [thread:$0]  %s494, 32, %s491, %s472
        $region32: #{tpu_custom_call.1} parent=27 // pred_fallthru
          _
        // Predicated region
        $region33: #{tpu_custom_call.1} parent=27 // pred_check
          %p497 = pneg %p137
        $region34: #{tpu_custom_call.1} parent=27 // pred_check_branch
          %499 = sbr.rel (%p497) target = $region36
        $region35: #{tpu_custom_call.1} parent=27 // pred_region
          %s500 = smul.u32 2, %s26
          %s502 = ssub.s32 32, 32
          %503 = vsyncadd %s477, %s502
          %s504 = smul.addr %s25, 2
          %s505 = sadd.s32 %s500, %s504
          %s506 = smul.addr %s505, 16
          %s507 = scalar_lea.hbm %s3, %s506
          %s509 = sshll.u32 %s480, 4
          %s510 = int_to_ptr.vmem [resolvable:$true] %s509
          %512 = dma.vmem_to_hbm [thread:$0]  %s510, 32, %s507, %s477
        $region36: #{tpu_custom_call.1} parent=27 // pred_fallthru
          _
      $region28: #{tpu_custom_call.1} parent=5 // pred_fallthru
        _
      %p513 = scmp.le.s32.totalorder 2, %s16
      // Predicated region
      $region37: #{tpu_custom_call.1} parent=5 // pred_check
        %p514 = pneg %p513
      $region38: #{tpu_custom_call.1} parent=5 // pred_check_branch
        %516 = sbr.rel (%p514) target = $region40
      $region39: #{tpu_custom_call.1} parent=5 // pred_region
        %s517 = ssub.s32 %s16, 2
        // Predicated region
        $region41: #{tpu_custom_call.1} parent=39 // pred_check
          %p518 = pneg %p115
        $region42: #{tpu_custom_call.1} parent=39 // pred_check_branch
          %520 = sbr.rel (%p518) target = $region44
        $region43: #{tpu_custom_call.1} parent=39 // pred_region
          %s521 = sand.u32 %s100, 1
          %s522 = scalar_lea.sflag [#allocation3], %s521
          %s523 = sand.u32 %s100, 1
          %s524 = smul.addr %s523, 2
          %s525 = scalar_lea.vmem [#allocation2], %s524
          %526 = dma.done %s522, 32
        $region44: #{tpu_custom_call.1} parent=39 // pred_fallthru
          _
        // Predicated region
        $region45: #{tpu_custom_call.1} parent=39 // pred_check
          %p527 = pneg %p143
        $region46: #{tpu_custom_call.1} parent=39 // pred_check_branch
          %529 = sbr.rel (%p527) target = $region48
        $region47: #{tpu_custom_call.1} parent=39 // pred_region
          %s530 = sand.u32 %s128, 1
          %s531 = scalar_lea.sflag [#allocation5], %s530
          %s532 = sand.u32 %s128, 1
          %s533 = smul.addr %s532, 2
          %s534 = scalar_lea.vmem [#allocation4], %s533
          %535 = dma.done %s531, 32
        $region48: #{tpu_custom_call.1} parent=39 // pred_fallthru
          _
      $region40: #{tpu_custom_call.1} parent=5 // pred_fallthru
        _
    $region6: #{tpu_custom_call.1} parent=1 // loop_footer
      %s20 = sadd.s32 1, %s16
    $region7: #{tpu_custom_call.1} parent=1 // loop_footer_branch
      %15 = sbr.rel target = $region3
    $region8: #{tpu_custom_call.1} parent=1 // loop_exit
      _
    %536 = vsyncpa [#allocation3], 1
    %s537 = scalar_lea.sflag [#allocation3], 1
    %538 = vsyncpa %s537, 1
    %539 = vsyncpa [#allocation5], 1
    %s540 = scalar_lea.sflag [#allocation5], 1
    %541 = vsyncpa %s540, 1

</llo_original>
